<compile_context>
chip_gen: v5e
topology: v5e:2x2
jax: 0.10.0
libtpu: 0.0.40
codegen_flags: <defaults>
</compile_context>

<pallas_src>
import jax
import jax.numpy as jnp
from jax.experimental import pallas as pl
from jax.experimental.pallas import tpu as pltpu

_LANES = 128


def _mixup_kernel(permut_ref, lamb_ref, x_ref, xperm_ref, out_ref):
    """out[b] = lamb * x[b] + (1 - lamb) * x[permut[b]] for one batch row."""
    del permut_ref  # consumed by the index_maps (scalar prefetch), not by the body
    lam = lamb_ref[0]
    out_ref[...] = (lam * x_ref[...] + (1.0 - lam) * xperm_ref[...]).astype(out_ref.dtype)


def mixup_forward(x, lamb, permut, *, training=True, enable=True):
    """Pallas implementation of Mixup.forward().

    training & enable:  lamb * x + (1 - lamb) * x[permut]
    otherwise:          x (identity — returned directly, no kernel launch)
    """
    if not (training and enable):
        return x

    orig_shape = x.shape
    orig_dtype = x.dtype
    batch = orig_shape[0]
    feat = 1
    for d in orig_shape[1:]:
        feat *= d

    # Lane-dense view: (B, S, 128).  The last two block dims equal the full array
    # dims, so the (8, 128) tiling constraint is always satisfied.
    feat_pad = ((feat + _LANES - 1) // _LANES) * _LANES
    x2 = x.reshape(batch, feat)
    if feat_pad != feat:
        x2 = jnp.pad(x2, ((0, 0), (0, feat_pad - feat)))
    sub = feat_pad // _LANES
    x3 = x2.reshape(batch, sub, _LANES)

    lamb_arr = jnp.asarray(lamb, jnp.float32).reshape(1)   # SMEM scalar: no recompile per batch
    permut_arr = jnp.asarray(permut, jnp.int32)            # gather indices for the index_map

    block = (1, sub, _LANES)
    out = pl.pallas_call(
        _mixup_kernel,
        out_shape=jax.ShapeDtypeStruct((batch, sub, _LANES), orig_dtype),
        grid_spec=pltpu.PrefetchScalarGridSpec(
            num_scalar_prefetch=1,                               # permut -> SMEM, visible to index_maps
            grid=(batch,),
            in_specs=[
                pl.BlockSpec(memory_space=pltpu.SMEM),                        # lamb (f32 scalar)
                pl.BlockSpec(block, lambda b, permut: (b, 0, 0)),             # x[b]
                pl.BlockSpec(block, lambda b, permut: (permut[b], 0, 0)),     # x[permut[b]] (DMA gather)
            ],
            out_specs=pl.BlockSpec(block, lambda b, permut: (b, 0, 0)),
        ),
        compiler_params=pltpu.CompilerParams(
            dimension_semantics=("parallel",)),                  # rows independent -> 2-TC / megacore split
    )(permut_arr, lamb_arr, x3, x3)

    return out.reshape(batch, feat_pad)[:, :feat].reshape(orig_shape)


if __name__ == "__main__":
    key = jax.random.PRNGKey(0)
    k_x, k_beta, k_perm = jax.random.split(key, 3)

    # Small shapes consistent with an image-batch forward: (batch, channels, H, W)
    batch, channels, height, width = 2, 4, 16, 16
    x = jax.random.normal(k_x, (batch, channels, height, width), jnp.float32)

    # Mixup.sample(): lamb ~ Beta(beta, beta); permut = randperm(batch).
    # Kept on-device (no int()/host sync).  requires_grad bookkeeping is a
    # training-framework concern, not part of the forward math.
    beta_params = 2.0
    lamb = jax.random.beta(k_beta, beta_params, beta_params)
    permut = jax.random.permutation(k_perm, batch)

    # training + enabled path (mixes the batch)
    out_train = mixup_forward(x, lamb, permut, training=True, enable=True)
    # eval path (identity)
    out_eval = mixup_forward(x, lamb, permut, training=False, enable=True)
    jax.block_until_ready((out_train, out_eval))

    # Pure-JAX reference for the mixup formula.
    lam_f = lamb.astype(jnp.float32)
    ref = lam_f * x + (1.0 - lam_f) * x[permut]

    assert out_train.shape == x.shape and out_train.dtype == x.dtype
    assert jnp.allclose(out_train, ref, atol=1e-6, rtol=1e-6)
    assert bool(jnp.all(out_eval == x))

    print("KERNEL_OK")
</pallas_src>

<mosaic_0001>
module attributes {stable_mosaic.version = 11 : i64} {
  func.func @_mixup_kernel(%arg0: i32, %arg1: memref<2xi32, #tpu.memory_space<smem>>, %arg2: memref<1xf32, #tpu.memory_space<smem>>, %arg3: memref<1x8x128xf32, #tpu.memory_space<vmem>>, %arg4: memref<1x8x128xf32, #tpu.memory_space<vmem>>, %arg5: memref<1x8x128xf32, #tpu.memory_space<vmem>>) attributes {dimension_semantics = [#tpu.dimension_semantics<parallel>], iteration_bounds = array<i64: 2>, scalar_prefetch = 1 : i64, scratch_operands = 0 : i64, tpu.core_type = #tpu.core_type<tc>, window_params = [{transform_indices = @transform_0, window_bounds = array<i64: 1>}, {transform_indices = @transform_1, window_bounds = array<i64: 1, 8, 128>}, {transform_indices = @transform_2, window_bounds = array<i64: 1, 8, 128>}, {transform_indices = @transform_3, window_bounds = array<i64: 1, 8, 128>}]} {
    %c0 = arith.constant 0 : index
    %0 = memref.load %arg2[%c0] : memref<1xf32, #tpu.memory_space<smem>>
    %c0_0 = arith.constant 0 : index
    %c0_1 = arith.constant 0 : index
    %c0_2 = arith.constant 0 : index
    %1 = vector.load %arg3[%c0_0, %c0_1, %c0_2] : memref<1x8x128xf32, #tpu.memory_space<vmem>>, vector<1x8x128xf32>
    %2 = vector.broadcast %0 : f32 to vector<1x8x128xf32>
    %3 = arith.mulf %2, %1 : vector<1x8x128xf32>
    %cst = arith.constant 1.000000e+00 : f32
    %4 = arith.subf %cst, %0 : f32
    %c0_3 = arith.constant 0 : index
    %c0_4 = arith.constant 0 : index
    %c0_5 = arith.constant 0 : index
    %5 = vector.load %arg4[%c0_3, %c0_4, %c0_5] : memref<1x8x128xf32, #tpu.memory_space<vmem>>, vector<1x8x128xf32>
    %6 = vector.broadcast %4 : f32 to vector<1x8x128xf32>
    %7 = arith.mulf %6, %5 : vector<1x8x128xf32>
    %8 = arith.addf %3, %7 : vector<1x8x128xf32>
    %c0_6 = arith.constant 0 : index
    %c0_7 = arith.constant 0 : index
    %c0_8 = arith.constant 0 : index
    %9 = vector.load %arg5[%c0_6, %c0_7, %c0_8] : memref<1x8x128xf32, #tpu.memory_space<vmem>>, vector<1x8x128xf32>
    tpu.vector_store %arg5[%c0_6, %c0_7, %c0_8], %8 {strides = array<i32>} : memref<1x8x128xf32, #tpu.memory_space<vmem>>, vector<1x8x128xf32>,
    return
  }
  func.func @transform_0(%arg0: i32, %arg1: memref<2xi32, #tpu.memory_space<smem>>) -> i32 {
    %c0_i32 = arith.constant 0 : i32
    %c0_i32_0 = arith.constant 0 : i32
    return %c0_i32 : i32
  }
  func.func @transform_1(%arg0: i32, %arg1: memref<2xi32, #tpu.memory_space<smem>>) -> (i32, i32, i32) {
    %c0_i32 = arith.constant 0 : i32
    %c0_i32_0 = arith.constant 0 : i32
    %c0_i32_1 = arith.constant 0 : i32
    return %arg0, %c0_i32, %c0_i32_0 : i32, i32, i32
  }
  func.func @transform_2(%arg0: i32, %arg1: memref<2xi32, #tpu.memory_space<smem>>) -> (i32, i32, i32) {
    %0 = arith.index_cast %arg0 : i32 to index
    %1 = memref.load %arg1[%0] : memref<2xi32, #tpu.memory_space<smem>>
    %c0_i32 = arith.constant 0 : i32
    %c0_i32_0 = arith.constant 0 : i32
    %c0_i32_1 = arith.constant 0 : i32
    return %1, %c0_i32, %c0_i32_0 : i32, i32, i32
  }
  func.func @transform_3(%arg0: i32, %arg1: memref<2xi32, #tpu.memory_space<smem>>) -> (i32, i32, i32) {
    %c0_i32 = arith.constant 0 : i32
    %c0_i32_0 = arith.constant 0 : i32
    %c0_i32_1 = arith.constant 0 : i32
    return %arg0, %c0_i32, %c0_i32_0 : i32, i32, i32
  }
}

</mosaic_0001>

<llo_original>
// kernel: tpu_custom_call.1
$region0: #{tpu_custom_call.1}
  #allocation0 [shape = 'u32[]', space=smem, size = 0x4, offset = 0x4, fixed_abs, tag = 'smem constant byte address 0x4 - core index']
  #allocation1 [shape = 'u32[72,128]{1,0:T(1,128)}', space=vmem, size = 0x9000, scoped, tag = 'internal scratch']
  #allocation2 [shape = 's32[1]{0}', space=sflag, size = 0x4, scoped, tag = 'scoped memory for tpu_custom_call.1']
  #allocation3 [shape = 'u8[512]{0}', space=smem, size = 0x200, scoped, tag = 'prefetched SMEM operand 0']
  #allocation4 [shape = 'f32[1]{0:T(128)S(6)}', space=smem, size = 0x200, scoped, tag = 'scoped memory for tpu_custom_call.1']
  %s0 = inlined_call_operand.vmem [shape: s32[2], index: 0, kind: input, shape index: {}]
  %s1 = inlined_call_operand.<no memory space> [shape: f32[1], index: 1, kind: input, shape index: {}]
  %s2 = inlined_call_operand.hbm [shape: f32[2,8,128], index: 2, kind: input, shape index: {}]
  %s3 = inlined_call_operand.hbm [shape: f32[2,8,128], index: 3, kind: input, shape index: {}]
  %s4 = inlined_call_operand.hbm [shape: f32[2,8,128], index: 4, kind: output, shape index: {}]
  %s5 = sld [smem:[#allocation0]]
  $region53: #{tpu_custom_call.1} parent=0
    _
  %s7 = ssub.s32 1, %s5
  %s8 = scalar_select 0, %s7, %s5
  %s10 = sshll.u32 %s0, 4
  %s11 = int_to_ptr.vmem [resolvable:$true] %s10
  %13 = dma.vmem_to_smem %s11, 16, [#allocation3], [#allocation2]
  %14 = sst [smem:[#allocation4]] %s1
  %16 = dma.done [#allocation2], 16
  %17 = sfence
  $region1: #{tpu_custom_call.1} parent=0
    #allocation5 [shape = 'u8[8192]{0}', space=vmem, size = 0x2000, scoped, tag = 'input window, operand 2']
    #allocation6 [shape = 's32[2]{0}', space=sflag, size = 0x8, scoped, tag = 'scoped memory for tpu_custom_call.1']
    #allocation7 [shape = 's32[2]{0}', space=sflag, size = 0x8, scoped, tag = 'scoped memory for tpu_custom_call.1']
    #allocation8 [shape = 'u8[8192]{0}', space=vmem, size = 0x2000, scoped, tag = 'input window, operand 3']
    #allocation9 [shape = 's32[2]{0}', space=sflag, size = 0x8, scoped, tag = 'scoped memory for tpu_custom_call.1']
    #allocation10 [shape = 'u8[8192]{0}', space=vmem, size = 0x2000, scoped, tag = 'output window, operand 0']
    %18 = vsyncpa [#allocation6], 0
    %s19 = scalar_lea.sflag [#allocation6], 1
    %20 = vsyncpa %s19, 0
    %21 = vsyncpa [#allocation9], 0
    %s22 = scalar_lea.sflag [#allocation9], 1
    %23 = vsyncpa %s22, 0
    %24 = vsyncpa [#allocation7], 0
    %s25 = scalar_lea.sflag [#allocation7], 1
    %26 = vsyncpa %s25, 0
    loop: start=0, step=1, limit=4
    $region2: #{tpu_custom_call.1} parent=1 // loop_pre_header
      _
    $region3: #{tpu_custom_call.1} parent=1 // loop_header
      %s28 = sphi 0, %s32
      %p29 = scmp.ge.s32.totalorder %s28, 4
      %s36 = sphi 0, %s36
      %s38 = sphi 0, %s36
      %s39 = sphi 0, %s38
      %s53 = sphi 0, %s39
      %s59 = sphi 0, %s61
      %s62 = sphi 0, %s59
      %s63 = sphi 0, %s62
      %s79 = sphi 0, %s63
      %s87 = sphi 0, %s89
      %s90 = sphi 0, %s87
      %s91 = sphi 0, %s90
      %s107 = sphi 0, %s91
      %s113 = sphi 0, %s115
      %s116 = sphi 0, %s113
      %s117 = sphi 0, %s116
      %s133 = sphi 0, %s117
    $region4: #{tpu_custom_call.1} parent=1 // loop_header_branch
      %31 = sbr.rel (%p29) target = $region8
    $region5: #{tpu_custom_call.1} parent=1 // loop_body
      %s33 = ssub.s32 %s28, 1
      %s34 = ssub.s32 %s28, 2
      %s35 = sadd.s32 %s28, 1
      %s37 = sadd.s32 %s36, 1
      %p40 = scmp.eq.s32.totalorder %s28, 1
      %p41 = scmp.ne.s32.totalorder %s36, %s38
      %p42 = scmp.eq.s32.totalorder %s28, 0
      %p43 = por %p41, %p42
      %p44 = scmp.ne.s32.totalorder %s36, %s38
      %p45 = scmp.eq.s32.totalorder %s33, 1
      %p46 = por %p44, %p45
      %p47 = scmp.ne.s32.totalorder %s38, %s39
      %p48 = scmp.eq.s32.totalorder %s33, 0
      %p49 = por %p47, %p48
      %p50 = scmp.ne.s32.totalorder %s38, %s39
      %p51 = scmp.eq.s32.totalorder %s34, 1
      %p52 = por %p50, %p51
      %p54 = scmp.ne.s32.totalorder %s39, %s53
      %p55 = scmp.eq.s32.totalorder %s34, 0
      %p56 = por %p54, %p55
      %s57 = ssub.s32 %s28, %s35
      %p58 = scmp.eq.s32.totalorder %s57, 0
      %s60 = sadd.s32 %s59, 1
      %s61 = scalar_select %p58, %s59, %s60
      %p64 = pneg %p58
      %p65 = scmp.eq.s32.totalorder %s28, 1
      %p66 = por %p64, %p65
      %p67 = scmp.ne.s32.totalorder %s59, %s62
      %p68 = scmp.eq.s32.totalorder %s28, 0
      %p69 = por %p67, %p68
      %p70 = scmp.ne.s32.totalorder %s59, %s62
      %p71 = scmp.eq.s32.totalorder %s33, 1
      %p72 = por %p70, %p71
      %p73 = scmp.ne.s32.totalorder %s62, %s63
      %p74 = scmp.eq.s32.totalorder %s33, 0
      %p75 = por %p73, %p74
      %p76 = scmp.ne.s32.totalorder %s62, %s63
      %p77 = scmp.eq.s32.totalorder %s34, 1
      %p78 = por %p76, %p77
      %p80 = scmp.ne.s32.totalorder %s63, %s79
      %p81 = scmp.eq.s32.totalorder %s34, 0
      %p82 = por %p80, %p81
      %s83 = sld [smem:[#allocation3 + %s28]]
      %s84 = sld [smem:[#allocation3 + %s35]]
      %s85 = ssub.s32 %s83, %s84
      %p86 = scmp.eq.s32.totalorder %s85, 0
      %s88 = sadd.s32 %s87, 1
      %s89 = scalar_select %p86, %s87, %s88
      %p92 = pneg %p86
      %p93 = scmp.eq.s32.totalorder %s28, 1
      %p94 = por %p92, %p93
      %p95 = scmp.ne.s32.totalorder %s87, %s90
      %p96 = scmp.eq.s32.totalorder %s28, 0
      %p97 = por %p95, %p96
      %p98 = scmp.ne.s32.totalorder %s87, %s90
      %p99 = scmp.eq.s32.totalorder %s33, 1
      %p100 = por %p98, %p99
      %p101 = scmp.ne.s32.totalorder %s90, %s91
      %p102 = scmp.eq.s32.totalorder %s33, 0
      %p103 = por %p101, %p102
      %p104 = scmp.ne.s32.totalorder %s90, %s91
      %p105 = scmp.eq.s32.totalorder %s34, 1
      %p106 = por %p104, %p105
      %p108 = scmp.ne.s32.totalorder %s91, %s107
      %p109 = scmp.eq.s32.totalorder %s34, 0
      %p110 = por %p108, %p109
      %s111 = ssub.s32 %s28, %s35
      %p112 = scmp.eq.s32.totalorder %s111, 0
      %s114 = sadd.s32 %s113, 1
      %s115 = scalar_select %p112, %s113, %s114
      %p118 = pneg %p112
      %p119 = scmp.eq.s32.totalorder %s28, 1
      %p120 = por %p118, %p119
      %p121 = scmp.ne.s32.totalorder %s113, %s116
      %p122 = scmp.eq.s32.totalorder %s28, 0
      %p123 = por %p121, %p122
      %p124 = scmp.ne.s32.totalorder %s113, %s116
      %p125 = scmp.eq.s32.totalorder %s33, 1
      %p126 = por %p124, %p125
      %p127 = scmp.ne.s32.totalorder %s116, %s117
      %p128 = scmp.eq.s32.totalorder %s33, 0
      %p129 = por %p127, %p128
      %p130 = scmp.ne.s32.totalorder %s116, %s117
      %p131 = scmp.eq.s32.totalorder %s34, 1
      %p132 = por %p130, %p131
      %p134 = scmp.ne.s32.totalorder %s117, %s133
      %p135 = scmp.eq.s32.totalorder %s34, 0
      %p136 = por %p134, %p135
      %p137 = scmp.le.s32.totalorder 1, %s28
      %p138 = scmp.lt.s32.totalorder %s28, 3
      %p139 = pnand %p137, %p138
      %p140 = pneg %p139
      // Predicated region
      $region9: #{tpu_custom_call.1} parent=5 // pred_check
        _
      $region10: #{tpu_custom_call.1} parent=5 // pred_check_branch
        %142 = sbr.rel (%p139) target = $region12
      $region11: #{tpu_custom_call.1} parent=5 // pred_region
        %s143 = ssub.s32 %s28, 1
        // Predicated region
        $region13: #{tpu_custom_call.1} parent=11 // pred_check
          %p144 = pneg %p49
        $region14: #{tpu_custom_call.1} parent=11 // pred_check_branch
          %146 = sbr.rel (%p144) target = $region16
        $region15: #{tpu_custom_call.1} parent=11 // pred_region
          _
        $region16: #{tpu_custom_call.1} parent=11 // pred_fallthru
          _
      $region12: #{tpu_custom_call.1} parent=5 // pred_fallthru
        _
      %p147 = scmp.lt.s32.totalorder %s28, 2
      // Predicated region
      $region17: #{tpu_custom_call.1} parent=5 // pred_check
        %p148 = pneg %p147
      $region18: #{tpu_custom_call.1} parent=5 // pred_check_branch
        %150 = sbr.rel (%p148) target = $region20
      $region19: #{tpu_custom_call.1} parent=5 // pred_region
        // Predicated region
        $region21: #{tpu_custom_call.1} parent=19 // pred_check
          %p151 = pneg %p69
        $region22: #{tpu_custom_call.1} parent=19 // pred_check_branch
          %153 = sbr.rel (%p151) target = $region24
        $region23: #{tpu_custom_call.1} parent=19 // pred_region
          %s154 = sand.u32 %s59, 1
          %s155 = scalar_lea.sflag [#allocation6], %s154
          %s156 = sand.u32 %s59, 1
          %s157 = smul.addr %s156, 8
          %s158 = scalar_lea.vmem [#allocation5], %s157
          %160 = vsyncadd %s155, 0
          %s161 = smul.addr %s28, 8
          %s162 = scalar_lea.hbm %s2, %s161
          %s164 = sshll.u32 %s162, 4
          %s165 = int_to_ptr.hbm [resolvable:$true] %s164
          %s166 = sshll.u32 %s158, 4
          %s167 = int_to_ptr.vmem [resolvable:$true] %s166
          %169 = dma.hbm_to_vmem [thread:$0]  %s165, 128, %s167, %s155
        $region24: #{tpu_custom_call.1} parent=19 // pred_fallthru
          _
        // Predicated region
        $region25: #{tpu_custom_call.1} parent=19 // pred_check
          %p170 = pneg %p97
        $region26: #{tpu_custom_call.1} parent=19 // pred_check_branch
          %172 = sbr.rel (%p170) target = $region28
        $region27: #{tpu_custom_call.1} parent=19 // pred_region
          %s173 = sand.u32 %s87, 1
          %s174 = scalar_lea.sflag [#allocation9], %s173
          %s175 = sand.u32 %s87, 1
          %s176 = smul.addr %s175, 8
          %s177 = scalar_lea.vmem [#allocation8], %s176
          %s178 = sld [smem:[#allocation3 + %s28]]
          %180 = vsyncadd %s174, 0
          %s181 = smul.addr %s178, 8
          %s182 = scalar_lea.hbm %s3, %s181
          %s184 = sshll.u32 %s182, 4
          %s185 = int_to_ptr.hbm [resolvable:$true] %s184
          %s186 = sshll.u32 %s177, 4
          %s187 = int_to_ptr.vmem [resolvable:$true] %s186
          %189 = dma.hbm_to_vmem [thread:$0]  %s185, 128, %s187, %s174
        $region28: #{tpu_custom_call.1} parent=19 // pred_fallthru
          _
      $region20: #{tpu_custom_call.1} parent=5 // pred_fallthru
        _
      %p190 = scmp.le.s32.totalorder 1, %s28
      %p191 = scmp.lt.s32.totalorder %s28, 3
      %p192 = pnand %p190, %p191
      %p193 = pneg %p192
      // Predicated region
      $region29: #{tpu_custom_call.1} parent=5 // pred_check
        _
      $region30: #{tpu_custom_call.1} parent=5 // pred_check_branch
        %195 = sbr.rel (%p192) target = $region32
      $region31: #{tpu_custom_call.1} parent=5 // pred_region
        %s196 = ssub.s32 %s28, 1
        %s197 = sand.u32 %s62, 1
        %s198 = scalar_lea.sflag [#allocation6], %s197
        %s199 = sand.u32 %s62, 1
        %s200 = smul.addr %s199, 8
        %s201 = scalar_lea.vmem [#allocation5], %s200
        // Predicated region
        $region33: #{tpu_custom_call.1} parent=31 // pred_check
          %p202 = pneg %p75
        $region34: #{tpu_custom_call.1} parent=31 // pred_check_branch
          %204 = sbr.rel (%p202) target = $region36
        $region35: #{tpu_custom_call.1} parent=31 // pred_region
          %206 = dma.done %s198, 128
        $region36: #{tpu_custom_call.1} parent=31 // pred_fallthru
          _
        %s207 = sand.u32 %s90, 1
        %s208 = scalar_lea.sflag [#allocation9], %s207
        %s209 = sand.u32 %s90, 1
        %s210 = smul.addr %s209, 8
        %s211 = scalar_lea.vmem [#allocation8], %s210
        // Predicated region
        $region37: #{tpu_custom_call.1} parent=31 // pred_check
          %p212 = pneg %p103
        $region38: #{tpu_custom_call.1} parent=31 // pred_check_branch
          %214 = sbr.rel (%p212) target = $region40
        $region39: #{tpu_custom_call.1} parent=31 // pred_region
          %216 = dma.done %s208, 128
        $region40: #{tpu_custom_call.1} parent=31 // pred_fallthru
          _
        %p217 = pneg %p49
        %p218 = pneg %p46
        %s219 = sand.u32 %s62, 1
        %s220 = scalar_lea.sflag [#allocation6], %s219
        %s221 = sand.u32 %s62, 1
        %s222 = smul.addr %s221, 8
        %s223 = scalar_lea.vmem [#allocation5], %s222
        %p224 = pneg %p75
        %p225 = pneg %p72
        %s226 = sand.u32 %s90, 1
        %s227 = scalar_lea.sflag [#allocation9], %s226
        %s228 = sand.u32 %s90, 1
        %s229 = smul.addr %s228, 8
        %s230 = scalar_lea.vmem [#allocation8], %s229
        %p231 = pneg %p103
        %p232 = pneg %p100
        %p233 = pneg %p129
        %p234 = pneg %p126
        %s235 = sand.u32 %s116, 1
        %s236 = scalar_lea.sflag [#allocation7], %s235
        %s237 = sand.u32 %s116, 1
        %s238 = smul.addr %s237, 8
        %s239 = scalar_lea.vmem [#allocation10], %s238
        %s240 = sld [smem:[#allocation3 + %s33]]
        %s241 = sld [smem:[#allocation4]]
        %v242 = vld [vmem:[%s201] sm:$0xff]
        %v243 = vstv %s241
        %v244 = vmul.f32 %v243, %v242
        %s245 = ssub.f32 1.0, %s241
        %v246 = vld [vmem:[%s211] sm:$0xff]
        %v247 = vstv %s245
        %v248 = vmul.f32 %v247, %v246
        %v249 = vadd.f32 %v244, %v248
        %250 = vst [vmem:[%s239] sm:$0xff] %v249
        %s251 = sand.u32 %s116, 1
        %s252 = scalar_lea.sflag [#allocation7], %s251
        %s253 = sand.u32 %s116, 1
        %s254 = smul.addr %s253, 8
        %s255 = scalar_lea.vmem [#allocation10], %s254
        // Predicated region
        $region41: #{tpu_custom_call.1} parent=31 // pred_check
          %p256 = pneg %p126
        $region42: #{tpu_custom_call.1} parent=31 // pred_check_branch
          %258 = sbr.rel (%p256) target = $region44
        $region43: #{tpu_custom_call.1} parent=31 // pred_region
          %260 = vsyncadd %s252, 0
          %s261 = smul.addr %s33, 8
          %s262 = scalar_lea.hbm %s4, %s261
          %s264 = sshll.u32 %s255, 4
          %s265 = int_to_ptr.vmem [resolvable:$true] %s264
          %s266 = sshll.u32 %s262, 4
          %s267 = int_to_ptr.hbm [resolvable:$true] %s266
          %269 = dma.vmem_to_hbm [thread:$0]  %s265, 128, %s267, %s252
        $region44: #{tpu_custom_call.1} parent=31 // pred_fallthru
          _
      $region32: #{tpu_custom_call.1} parent=5 // pred_fallthru
        _
      %p270 = scmp.le.s32.totalorder 2, %s28
      // Predicated region
      $region45: #{tpu_custom_call.1} parent=5 // pred_check
        %p271 = pneg %p270
      $region46: #{tpu_custom_call.1} parent=5 // pred_check_branch
        %273 = sbr.rel (%p271) target = $region48
      $region47: #{tpu_custom_call.1} parent=5 // pred_region
        %s274 = ssub.s32 %s28, 2
        // Predicated region
        $region49: #{tpu_custom_call.1} parent=47 // pred_check
          %p275 = pneg %p132
        $region50: #{tpu_custom_call.1} parent=47 // pred_check_branch
          %277 = sbr.rel (%p275) target = $region52
        $region51: #{tpu_custom_call.1} parent=47 // pred_region
          %s278 = sand.u32 %s117, 1
          %s279 = scalar_lea.sflag [#allocation7], %s278
          %s280 = sand.u32 %s117, 1
          %s281 = smul.addr %s280, 8
          %s282 = scalar_lea.vmem [#allocation10], %s281
          %284 = dma.done %s279, 128
        $region52: #{tpu_custom_call.1} parent=47 // pred_fallthru
          _
      $region48: #{tpu_custom_call.1} parent=5 // pred_fallthru
        _
    $region6: #{tpu_custom_call.1} parent=1 // loop_footer
      %s32 = sadd.s32 1, %s28
    $region7: #{tpu_custom_call.1} parent=1 // loop_footer_branch
      %27 = sbr.rel target = $region3
    $region8: #{tpu_custom_call.1} parent=1 // loop_exit
      _
    %285 = vsyncpa [#allocation6], 1
    %s286 = scalar_lea.sflag [#allocation6], 1
    %287 = vsyncpa %s286, 1
    %288 = vsyncpa [#allocation9], 1
    %s289 = scalar_lea.sflag [#allocation9], 1
    %290 = vsyncpa %s289, 1
    %291 = vsyncpa [#allocation7], 1
    %s292 = scalar_lea.sflag [#allocation7], 1
    %293 = vsyncpa %s292, 1

</llo_original>
